<compile_context>
chip_gen: v6e
topology: v6e:2x2x1
jax: 0.10.0
libtpu: 0.0.40
codegen_flags: <defaults>
</compile_context>

<pallas_src>
import functools

import numpy as np

import jax
import jax.numpy as jnp
from jax.experimental import pallas as pl
from jax.experimental.pallas import tpu as pltpu

BN_EPS = 1e-5


def _round_up(x, m):
    return ((x + m - 1) // m) * m


def _cdiv(a, b):
    return (a + b - 1) // b


def _vmem_limit_bytes():
    """Generation-aware scoped-VMEM request: <= 3/4 of physical, capped at 96 MiB."""
    try:
        cap = int(pltpu.get_tpu_info().vmem_capacity_bytes)
    except Exception:
        cap = 64 << 20  # assume the smallest per-core VMEM (v7x)
    return int(min(96 << 20, (cap * 3) // 4))


# ---------------------------------------------------------------------------
# Fast path: fully fused single kernel (conv + BN stats + BN + ReLU).
# ---------------------------------------------------------------------------
def _fused_forward(x, weight, gamma, beta, *, k, s, p, n, cin, cout, h, w, ho, wo):
    kq = _cdiv(k, s)                                   # taps per spatial phase
    hb = max(ho + kq - 1, _cdiv(h + 2 * p, s))         # phase-plane height
    wb = max(wo + kq - 1, _cdiv(w + 2 * p, s))         # phase-plane width
    mfull = n * hb * wb                                 # superset of output columns
    mc = _round_up(mfull, 128)                          # lane-dense compute width
    max_off = (kq - 1) * wb + (kq - 1)
    fcols = _round_up(mc + max_off, 128)
    kdim = cin * k * k
    count = float(n * ho * wo)

    # --- light wrapper prep: pad + space-to-depth (1x traffic, no K^2 inflation) -------
    x_pad = jnp.pad(x.astype(jnp.float32),
                    ((0, 0), (0, 0),
                     (p, s * hb - h - p), (p, s * wb - w - p)))
    # (N,Cin,s*Hb,s*Wb) -> (s,s,Cin,N,Hb,Wb): phase (rh,rw) leading, columns = (n,hb,wb)
    x_sd = x_pad.reshape(n, cin, hb, s, wb, s).transpose(3, 5, 1, 0, 2, 4)
    f_all = x_sd.reshape(s * s * cin, mfull)
    f_all = jnp.pad(f_all, ((0, 0), (0, fcols - mfull)))

    # weight columns ordered (kh, kw, ci) to match the in-kernel patch-row assembly.
    w_mat = weight.transpose(0, 2, 3, 1).reshape(cout, kdim).astype(jnp.float32)

    # Static column-validity mask (baked constant: garbage superset columns are excluded
    # from the BN statistics; they are sliced away from the output in the wrapper).
    col = np.arange(mc)
    valid = (col < mfull) & (((col % (hb * wb)) // wb) < ho) & ((col % wb) < wo)
    mask = jnp.asarray(valid.astype(np.float32).reshape(1, mc))

    # Per-tap (source phase rows, column shift) — all static Python ints.
    taps = []
    for kh in range(k):
        qh, rh = divmod(kh, s)
        for kw in range(k):
            qw, rw = divmod(kw, s)
            taps.append(((rh * s + rw) * cin, qh * wb + qw))

    def fused_kernel(f_ref, w_ref, g_ref, b_ref, m_ref, o_ref, xt_ref):
        # In-kernel im2col: K*K static-slice copies of the phase-split input into the
        # (Cin*K*K, Mc) patch matrix resident in VMEM scratch.
        for t, (row0, coff) in enumerate(taps):
            xt_ref[t * cin:(t + 1) * cin, :] = f_ref[row0:row0 + cin, coff:coff + mc]
        # Conv as one lane-dense transposed matmul (bias dropped: cancelled by BN mean).
        y = jnp.dot(w_ref[...], xt_ref[...], preferred_element_type=jnp.float32)
        # BN batch statistics over valid columns only.
        msk = m_ref[...]
        mean = jnp.sum(y * msk, axis=-1, keepdims=True) * (1.0 / count)
        var = jnp.sum(y * y * msk, axis=-1, keepdims=True) * (1.0 / count) - mean * mean
        var = jnp.maximum(var, 0.0)
        scale = g_ref[...] * jax.lax.rsqrt(var + BN_EPS)
        shift = b_ref[...] - mean * scale
        o_ref[...] = jnp.maximum(y * scale + shift, 0.0)

    y_full = pl.pallas_call(
        fused_kernel,
        out_shape=jax.ShapeDtypeStruct((cout, mc), jnp.float32),
        scratch_shapes=[pltpu.VMEM((kdim, mc), jnp.float32)],
        compiler_params=pltpu.CompilerParams(vmem_limit_bytes=_vmem_limit_bytes()),
    )(f_all, w_mat,
      gamma.reshape(cout, 1).astype(jnp.float32),
      beta.reshape(cout, 1).astype(jnp.float32),
      mask)

    # (Cout, Mc) superset -> NCHW: slice valid columns + leading-axis transpose only.
    out = y_full[:, :mfull].reshape(cout, n, hb, wb)[:, :, :ho, :wo]
    return jnp.transpose(out, (1, 0, 2, 3))


# ---------------------------------------------------------------------------
# General path (large shapes): tiled two-pass kernels.
# ---------------------------------------------------------------------------
def _conv_stats_kernel(xt_ref, w_ref, y_ref, stats_ref):
    # xt_ref : (Kdim, TM)   transposed im2col tile (M on the lane axis)
    # y_ref  : (Cout, TM)   conv tile (bias omitted: cancelled by BN mean-sub)
    # stats  : (1, Cout, 128) per-tile partials; lane 0 = sum(y), lane 1 = sum(y*y)
    y = jnp.dot(w_ref[...], xt_ref[...], preferred_element_type=jnp.float32)
    y_ref[...] = y
    stats_ref[0, :, 0:1] = jnp.sum(y, axis=-1, keepdims=True)
    stats_ref[0, :, 1:2] = jnp.sum(y * y, axis=-1, keepdims=True)


def _bn_relu_kernel(y_ref, scale_ref, shift_ref, o_ref):
    o_ref[...] = jnp.maximum(y_ref[...] * scale_ref[...] + shift_ref[...], 0.0)


def _im2col_t(x_nhwc, k, s, p):
    """(N,H,W,Cin) -> transposed im2col (Cin*K*K, N*Ho*Wo); row order (ci, kh, kw)."""
    n, h, w, cin = x_nhwc.shape
    ho = (h + 2 * p - k) // s + 1
    wo = (w + 2 * p - k) // s + 1
    x_pad = jnp.pad(x_nhwc, ((0, 0), (p, p), (p, p), (0, 0)))
    cols = []
    for kh in range(k):
        for kw in range(k):
            cols.append(x_pad[:, kh:kh + s * ho:s, kw:kw + s * wo:s, :])
    patches = jnp.stack(cols, axis=0)                   # (K*K, N, Ho, Wo, Cin)
    patches = jnp.transpose(patches, (4, 0, 1, 2, 3))   # (Cin, K*K, N, Ho, Wo)
    return patches.reshape(cin * k * k, n * ho * wo)


def _tiled_forward(x, weight, gamma, beta, *, k, s, p, n, cin, cout, h, w, ho, wo):
    # TODO(synk): extend the fast path's in-kernel im2col here (memory_space=pl.ANY +
    # banded make_async_copy); the XLA im2col below still inflates conv-input reads.
    kdim = cin * k * k
    m = n * ho * wo
    xt = _im2col_t(jnp.transpose(x.astype(jnp.float32), (0, 2, 3, 1)), k, s, p)

    budget = _vmem_limit_bytes()
    # VMEM-derived lane tile; >= 2 even tiles so the v7x megacore gets work.
    tm_cap = max(512, min(8192, ((budget // 4) // ((kdim + 2 * cout) * 4 * 2) // 128) * 128))
    num_tiles = max(2, _cdiv(m, tm_cap))
    num_tiles += num_tiles % 2
    tm = _round_up(_cdiv(m, num_tiles), 128)
    m_pad = tm * num_tiles
    if m_pad != m:
        # Zero-padded columns give y == 0 exactly (no bias), so stats are unaffected.
        xt = jnp.pad(xt, ((0, 0), (0, m_pad - m)))

    w_mat = weight.reshape(cout, kdim).astype(jnp.float32)
    cparams = pltpu.CompilerParams(dimension_semantics=("parallel",),
                                   vmem_limit_bytes=budget)

    y_t, stats = pl.pallas_call(
        _conv_stats_kernel,
        out_shape=(jax.ShapeDtypeStruct((cout, m_pad), jnp.float32),
                   jax.ShapeDtypeStruct((num_tiles, cout, 128), jnp.float32)),
        grid_spec=pltpu.PrefetchScalarGridSpec(
            num_scalar_prefetch=0, grid=(num_tiles,),
            in_specs=[pl.BlockSpec((kdim, tm), lambda i: (0, i),
                                   pipeline_mode=pl.Buffered(3)),
                      pl.BlockSpec((cout, kdim), lambda i: (0, 0))],
            out_specs=[pl.BlockSpec((cout, tm), lambda i: (0, i)),
                       pl.BlockSpec((1, cout, 128), lambda i: (i, 0, 0))]),
        compiler_params=cparams,
    )(xt, w_mat)

    count = jnp.float32(m)
    mean = jnp.sum(stats[:, :, 0], axis=0) / count
    var = jnp.maximum(jnp.sum(stats[:, :, 1], axis=0) / count - mean * mean, 0.0)
    scale = gamma.astype(jnp.float32) * jax.lax.rsqrt(var + BN_EPS)
    shift = beta.astype(jnp.float32) - mean * scale

    out_t = pl.pallas_call(
        _bn_relu_kernel,
        out_shape=jax.ShapeDtypeStruct((cout, m_pad), jnp.float32),
        grid_spec=pltpu.PrefetchScalarGridSpec(
            num_scalar_prefetch=0, grid=(num_tiles,),
            in_specs=[pl.BlockSpec((cout, tm), lambda i: (0, i)),
                      pl.BlockSpec((cout, 1), lambda i: (0, 0)),
                      pl.BlockSpec((cout, 1), lambda i: (0, 0))],
            out_specs=pl.BlockSpec((cout, tm), lambda i: (0, i))),
        input_output_aliases={0: 0},   # BN+ReLU overwrites y_t in place
        compiler_params=cparams,
    )(y_t, scale.reshape(cout, 1), shift.reshape(cout, 1))

    out = out_t[:, :m].reshape(cout, n, ho, wo)
    return jnp.transpose(out, (1, 0, 2, 3))


# ---------------------------------------------------------------------------
# Public entry point.
# ---------------------------------------------------------------------------
@functools.partial(jax.jit, static_argnames=("kernel_size", "ratio"))
def downsample2d(x_nchw, weight, bias, gamma, beta, *, kernel_size, ratio):
    """PyTorch-equivalent forward of Downsample2D (Conv2d -> BatchNorm2d(train) -> ReLU)."""
    if kernel_size - ratio < 2:
        raise ValueError("K - S must > 2")
    k, s = kernel_size, ratio
    p = (k - s) // 2

    n, cin, h, w = x_nchw.shape
    cout = weight.shape[0]
    ho = (h + 2 * p - k) // s + 1
    wo = (w + 2 * p - k) // s + 1

    # `bias` intentionally unused: training-mode BN mean subtraction cancels it exactly.
    _ = bias

    statics = dict(k=k, s=s, p=p, n=n, cin=cin, cout=cout, h=h, w=w, ho=ho, wo=wo)

    # Fast-path VMEM footprint estimate (phase planes + patch scratch + output, f32).
    kq = _cdiv(k, s)
    hb = max(ho + kq - 1, _cdiv(h + 2 * p, s))
    wb = max(wo + kq - 1, _cdiv(w + 2 * p, s))
    mc = _round_up(n * hb * wb, 128)
    fcols = _round_up(mc + (kq - 1) * wb + (kq - 1), 128)
    fast_bytes = 4 * (s * s * cin * fcols + cin * k * k * mc + (cout + 2) * mc)

    if fast_bytes <= min(24 << 20, _vmem_limit_bytes() // 3):
        return _fused_forward(x_nchw, weight, gamma, beta, **statics)
    return _tiled_forward(x_nchw, weight, gamma, beta, **statics)


def _reference(x_nchw, weight, bias, gamma, beta, kernel_size, ratio):
    padding = (kernel_size - ratio) // 2
    y = jax.lax.conv_general_dilated(
        x_nchw, weight, window_strides=(ratio, ratio),
        padding=[(padding, padding), (padding, padding)],
        dimension_numbers=("NCHW", "OIHW", "NCHW"),
        precision=jax.lax.Precision.HIGHEST)
    y = y + bias.reshape(1, -1, 1, 1)
    mean = jnp.mean(y, axis=(0, 2, 3), keepdims=True)
    var = jnp.mean((y - mean) ** 2, axis=(0, 2, 3), keepdims=True)
    y = (y - mean) * jax.lax.rsqrt(var + BN_EPS)
    y = y * gamma.reshape(1, -1, 1, 1) + beta.reshape(1, -1, 1, 1)
    return jnp.maximum(y, 0.0)


if __name__ == "__main__":
    # Module config: Downsample2D(in_channels=4, out_channels=8, kernel_size=4, ratio=2)
    N, CIN, H, W = 2, 4, 16, 16
    COUT, K, RATIO = 8, 4, 2

    key = jax.random.PRNGKey(0)
    kx, kw, kb = jax.random.split(key, 3)

    x = jax.random.normal(kx, (N, CIN, H, W), dtype=jnp.float32)

    # Deterministic parameter init (Conv2d-style uniform bound = 1/sqrt(fan_in)).
    fan_in = CIN * K * K
    bound = 1.0 / float(np.sqrt(fan_in))
    weight = jax.random.uniform(kw, (COUT, CIN, K, K), jnp.float32, -bound, bound)
    bias = jax.random.uniform(kb, (COUT,), jnp.float32, -bound, bound)
    gamma = jnp.ones((COUT,), jnp.float32)   # BatchNorm2d default init
    beta = jnp.zeros((COUT,), jnp.float32)

    out = downsample2d(x, weight, bias, gamma, beta, kernel_size=K, ratio=RATIO)
    out = jax.block_until_ready(out)

    ref = _reference(x, weight, bias, gamma, beta, K, RATIO)
    assert out.shape == ref.shape == (N, COUT, H // RATIO, W // RATIO), out.shape
    assert jnp.allclose(out, ref, atol=1e-4, rtol=1e-4), float(jnp.max(jnp.abs(out - ref)))

    print("KERNEL_OK")
</pallas_src>

<mosaic_0001>
module attributes {stable_mosaic.version = 11 : i64} {
  func.func @fused_kernel(%arg0: memref<16x384xf32, #tpu.memory_space<vmem>>, %arg1: memref<8x64xf32, #tpu.memory_space<vmem>>, %arg2: memref<8x1xf32, #tpu.memory_space<vmem>>, %arg3: memref<8x1xf32, #tpu.memory_space<vmem>>, %arg4: memref<1x256xf32, #tpu.memory_space<vmem>>, %arg5: memref<8x256xf32, #tpu.memory_space<vmem>>, %arg6: memref<64x256xf32, #tpu.memory_space<vmem>>) attributes {dimension_semantics = [], scalar_prefetch = 0 : i64, scratch_operands = 1 : i64, tpu.core_type = #tpu.core_type<tc>} {
    %c0 = arith.constant 0 : index
    %c0_0 = arith.constant 0 : index
    %0 = vector.load %arg0[%c0, %c0_0] : memref<16x384xf32, #tpu.memory_space<vmem>>, vector<4x256xf32>
    %c0_1 = arith.constant 0 : index
    %c0_2 = arith.constant 0 : index
    %1 = vector.load %arg6[%c0_1, %c0_2] : memref<64x256xf32, #tpu.memory_space<vmem>>, vector<4x256xf32>
    tpu.vector_store %arg6[%c0_1, %c0_2], %0 {strides = array<i32>} : memref<64x256xf32, #tpu.memory_space<vmem>>, vector<4x256xf32>,
    %c4 = arith.constant 4 : index
    %c0_3 = arith.constant 0 : index
    %2 = vector.load %arg0[%c4, %c0_3] : memref<16x384xf32, #tpu.memory_space<vmem>>, vector<4x256xf32>
    %c4_4 = arith.constant 4 : index
    %c0_5 = arith.constant 0 : index
    %3 = vector.load %arg6[%c4_4, %c0_5] : memref<64x256xf32, #tpu.memory_space<vmem>>, vector<4x256xf32>
    tpu.vector_store %arg6[%c4_4, %c0_5], %2 {strides = array<i32>} : memref<64x256xf32, #tpu.memory_space<vmem>>, vector<4x256xf32>,
    %c0_6 = arith.constant 0 : index
    %c1 = arith.constant 1 : index
    %4 = vector.load %arg0[%c0_6, %c1] : memref<16x384xf32, #tpu.memory_space<vmem>>, vector<4x256xf32>
    %c8 = arith.constant 8 : index
    %c0_7 = arith.constant 0 : index
    %5 = vector.load %arg6[%c8, %c0_7] : memref<64x256xf32, #tpu.memory_space<vmem>>, vector<4x256xf32>
    tpu.vector_store %arg6[%c8, %c0_7], %4 {strides = array<i32>} : memref<64x256xf32, #tpu.memory_space<vmem>>, vector<4x256xf32>,
    %c4_8 = arith.constant 4 : index
    %c1_9 = arith.constant 1 : index
    %6 = vector.load %arg0[%c4_8, %c1_9] : memref<16x384xf32, #tpu.memory_space<vmem>>, vector<4x256xf32>
    %c12 = arith.constant 12 : index
    %c0_10 = arith.constant 0 : index
    %7 = vector.load %arg6[%c12, %c0_10] : memref<64x256xf32, #tpu.memory_space<vmem>>, vector<4x256xf32>
    tpu.vector_store %arg6[%c12, %c0_10], %6 {strides = array<i32>} : memref<64x256xf32, #tpu.memory_space<vmem>>, vector<4x256xf32>,
    %c8_11 = arith.constant 8 : index
    %c0_12 = arith.constant 0 : index
    %8 = vector.load %arg0[%c8_11, %c0_12] : memref<16x384xf32, #tpu.memory_space<vmem>>, vector<4x256xf32>
    %c16 = arith.constant 16 : index
    %c0_13 = arith.constant 0 : index
    %9 = vector.load %arg6[%c16, %c0_13] : memref<64x256xf32, #tpu.memory_space<vmem>>, vector<4x256xf32>
    tpu.vector_store %arg6[%c16, %c0_13], %8 {strides = array<i32>} : memref<64x256xf32, #tpu.memory_space<vmem>>, vector<4x256xf32>,
    %c12_14 = arith.constant 12 : index
    %c0_15 = arith.constant 0 : index
    %10 = vector.load %arg0[%c12_14, %c0_15] : memref<16x384xf32, #tpu.memory_space<vmem>>, vector<4x256xf32>
    %c20 = arith.constant 20 : index
    %c0_16 = arith.constant 0 : index
    %11 = vector.load %arg6[%c20, %c0_16] : memref<64x256xf32, #tpu.memory_space<vmem>>, vector<4x256xf32>
    tpu.vector_store %arg6[%c20, %c0_16], %10 {strides = array<i32>} : memref<64x256xf32, #tpu.memory_space<vmem>>, vector<4x256xf32>,
    %c8_17 = arith.constant 8 : index
    %c1_18 = arith.constant 1 : index
    %12 = vector.load %arg0[%c8_17, %c1_18] : memref<16x384xf32, #tpu.memory_space<vmem>>, vector<4x256xf32>
    %c24 = arith.constant 24 : index
    %c0_19 = arith.constant 0 : index
    %13 = vector.load %arg6[%c24, %c0_19] : memref<64x256xf32, #tpu.memory_space<vmem>>, vector<4x256xf32>
    tpu.vector_store %arg6[%c24, %c0_19], %12 {strides = array<i32>} : memref<64x256xf32, #tpu.memory_space<vmem>>, vector<4x256xf32>,
    %c12_20 = arith.constant 12 : index
    %c1_21 = arith.constant 1 : index
    %14 = vector.load %arg0[%c12_20, %c1_21] : memref<16x384xf32, #tpu.memory_space<vmem>>, vector<4x256xf32>
    %c28 = arith.constant 28 : index
    %c0_22 = arith.constant 0 : index
    %15 = vector.load %arg6[%c28, %c0_22] : memref<64x256xf32, #tpu.memory_space<vmem>>, vector<4x256xf32>
    tpu.vector_store %arg6[%c28, %c0_22], %14 {strides = array<i32>} : memref<64x256xf32, #tpu.memory_space<vmem>>, vector<4x256xf32>,
    %c0_23 = arith.constant 0 : index
    %c9 = arith.constant 9 : index
    %16 = vector.load %arg0[%c0_23, %c9] : memref<16x384xf32, #tpu.memory_space<vmem>>, vector<4x256xf32>
    %c32 = arith.constant 32 : index
    %c0_24 = arith.constant 0 : index
    %17 = vector.load %arg6[%c32, %c0_24] : memref<64x256xf32, #tpu.memory_space<vmem>>, vector<4x256xf32>
    tpu.vector_store %arg6[%c32, %c0_24], %16 {strides = array<i32>} : memref<64x256xf32, #tpu.memory_space<vmem>>, vector<4x256xf32>,
    %c4_25 = arith.constant 4 : index
    %c9_26 = arith.constant 9 : index
    %18 = vector.load %arg0[%c4_25, %c9_26] : memref<16x384xf32, #tpu.memory_space<vmem>>, vector<4x256xf32>
    %c36 = arith.constant 36 : index
    %c0_27 = arith.constant 0 : index
    %19 = vector.load %arg6[%c36, %c0_27] : memref<64x256xf32, #tpu.memory_space<vmem>>, vector<4x256xf32>
    tpu.vector_store %arg6[%c36, %c0_27], %18 {strides = array<i32>} : memref<64x256xf32, #tpu.memory_space<vmem>>, vector<4x256xf32>,
    %c0_28 = arith.constant 0 : index
    %c10 = arith.constant 10 : index
    %20 = vector.load %arg0[%c0_28, %c10] : memref<16x384xf32, #tpu.memory_space<vmem>>, vector<4x256xf32>
    %c40 = arith.constant 40 : index
    %c0_29 = arith.constant 0 : index
    %21 = vector.load %arg6[%c40, %c0_29] : memref<64x256xf32, #tpu.memory_space<vmem>>, vector<4x256xf32>
    tpu.vector_store %arg6[%c40, %c0_29], %20 {strides = array<i32>} : memref<64x256xf32, #tpu.memory_space<vmem>>, vector<4x256xf32>,
    %c4_30 = arith.constant 4 : index
    %c10_31 = arith.constant 10 : index
    %22 = vector.load %arg0[%c4_30, %c10_31] : memref<16x384xf32, #tpu.memory_space<vmem>>, vector<4x256xf32>
    %c44 = arith.constant 44 : index
    %c0_32 = arith.constant 0 : index
    %23 = vector.load %arg6[%c44, %c0_32] : memref<64x256xf32, #tpu.memory_space<vmem>>, vector<4x256xf32>
    tpu.vector_store %arg6[%c44, %c0_32], %22 {strides = array<i32>} : memref<64x256xf32, #tpu.memory_space<vmem>>, vector<4x256xf32>,
    %c8_33 = arith.constant 8 : index
    %c9_34 = arith.constant 9 : index
    %24 = vector.load %arg0[%c8_33, %c9_34] : memref<16x384xf32, #tpu.memory_space<vmem>>, vector<4x256xf32>
    %c48 = arith.constant 48 : index
    %c0_35 = arith.constant 0 : index
    %25 = vector.load %arg6[%c48, %c0_35] : memref<64x256xf32, #tpu.memory_space<vmem>>, vector<4x256xf32>
    tpu.vector_store %arg6[%c48, %c0_35], %24 {strides = array<i32>} : memref<64x256xf32, #tpu.memory_space<vmem>>, vector<4x256xf32>,
    %c12_36 = arith.constant 12 : index
    %c9_37 = arith.constant 9 : index
    %26 = vector.load %arg0[%c12_36, %c9_37] : memref<16x384xf32, #tpu.memory_space<vmem>>, vector<4x256xf32>
    %c52 = arith.constant 52 : index
    %c0_38 = arith.constant 0 : index
    %27 = vector.load %arg6[%c52, %c0_38] : memref<64x256xf32, #tpu.memory_space<vmem>>, vector<4x256xf32>
    tpu.vector_store %arg6[%c52, %c0_38], %26 {strides = array<i32>} : memref<64x256xf32, #tpu.memory_space<vmem>>, vector<4x256xf32>,
    %c8_39 = arith.constant 8 : index
    %c10_40 = arith.constant 10 : index
    %28 = vector.load %arg0[%c8_39, %c10_40] : memref<16x384xf32, #tpu.memory_space<vmem>>, vector<4x256xf32>
    %c56 = arith.constant 56 : index
    %c0_41 = arith.constant 0 : index
    %29 = vector.load %arg6[%c56, %c0_41] : memref<64x256xf32, #tpu.memory_space<vmem>>, vector<4x256xf32>
    tpu.vector_store %arg6[%c56, %c0_41], %28 {strides = array<i32>} : memref<64x256xf32, #tpu.memory_space<vmem>>, vector<4x256xf32>,
    %c12_42 = arith.constant 12 : index
    %c10_43 = arith.constant 10 : index
    %30 = vector.load %arg0[%c12_42, %c10_43] : memref<16x384xf32, #tpu.memory_space<vmem>>, vector<4x256xf32>
    %c60 = arith.constant 60 : index
    %c0_44 = arith.constant 0 : index
    %31 = vector.load %arg6[%c60, %c0_44] : memref<64x256xf32, #tpu.memory_space<vmem>>, vector<4x256xf32>
    tpu.vector_store %arg6[%c60, %c0_44], %30 {strides = array<i32>} : memref<64x256xf32, #tpu.memory_space<vmem>>, vector<4x256xf32>,
    %c0_45 = arith.constant 0 : index
    %c0_46 = arith.constant 0 : index
    %32 = vector.load %arg1[%c0_45, %c0_46] : memref<8x64xf32, #tpu.memory_space<vmem>>, vector<8x64xf32>
    %c0_47 = arith.constant 0 : index
    %c0_48 = arith.constant 0 : index
    %33 = vector.load %arg6[%c0_47, %c0_48] : memref<64x256xf32, #tpu.memory_space<vmem>>, vector<64x256xf32>
    %cst = arith.constant dense<0.000000e+00> : vector<8x256xf32>
    %34 = tpu.matmul %32, %33, %cst {dimension_numbers = #tpu.dot_dimension_numbers<[1], [0], [0], [1], [0, 0, 1, 1], [], []>} : vector<8x64xf32>, vector<64x256xf32>, vector<8x256xf32> -> vector<8x256xf32>
    %c0_49 = arith.constant 0 : index
    %c0_50 = arith.constant 0 : index
    %35 = vector.load %arg4[%c0_49, %c0_50] : memref<1x256xf32, #tpu.memory_space<vmem>>, vector<1x256xf32>
    %36 = vector.broadcast %35 : vector<1x256xf32> to vector<8x256xf32>
    %37 = arith.mulf %34, %36 : vector<8x256xf32>
    %cst_51 = arith.constant dense<0.000000e+00> : vector<8xf32>
    %38 = vector.multi_reduction <add>, %37, %cst_51 [1] : vector<8x256xf32> to vector<8xf32>
    %39 = vector.shape_cast %38 : vector<8xf32> to vector<8x1xf32>
    %cst_52 = arith.constant 7.812500e-03 : f32
    %40 = vector.broadcast %cst_52 : f32 to vector<8x1xf32>
    %41 = arith.mulf %39, %40 : vector<8x1xf32>
    %42 = arith.mulf %34, %34 : vector<8x256xf32>
    %43 = vector.broadcast %35 : vector<1x256xf32> to vector<8x256xf32>
    %44 = arith.mulf %42, %43 : vector<8x256xf32>
    %cst_53 = arith.constant dense<0.000000e+00> : vector<8xf32>
    %45 = vector.multi_reduction <add>, %44, %cst_53 [1] : vector<8x256xf32> to vector<8xf32>
    %46 = vector.shape_cast %45 : vector<8xf32> to vector<8x1xf32>
    %cst_54 = arith.constant 7.812500e-03 : f32
    %47 = vector.broadcast %cst_54 : f32 to vector<8x1xf32>
    %48 = arith.mulf %46, %47 : vector<8x1xf32>
    %49 = arith.mulf %41, %41 : vector<8x1xf32>
    %50 = arith.subf %48, %49 : vector<8x1xf32>
    %cst_55 = arith.constant 0.000000e+00 : f32
    %51 = vector.broadcast %cst_55 : f32 to vector<8x1xf32>
    %52 = arith.maximumf %50, %51 : vector<8x1xf32>
    %c0_56 = arith.constant 0 : index
    %c0_57 = arith.constant 0 : index
    %53 = vector.load %arg2[%c0_56, %c0_57] : memref<8x1xf32, #tpu.memory_space<vmem>>, vector<8x1xf32>
    %cst_58 = arith.constant 9.99999974E-6 : f32
    %54 = vector.broadcast %cst_58 : f32 to vector<8x1xf32>
    %55 = arith.addf %52, %54 : vector<8x1xf32>
    %56 = math.rsqrt %55 : vector<8x1xf32>
    %57 = arith.mulf %53, %56 : vector<8x1xf32>
    %c0_59 = arith.constant 0 : index
    %c0_60 = arith.constant 0 : index
    %58 = vector.load %arg3[%c0_59, %c0_60] : memref<8x1xf32, #tpu.memory_space<vmem>>, vector<8x1xf32>
    %59 = arith.mulf %41, %57 : vector<8x1xf32>
    %60 = arith.subf %58, %59 : vector<8x1xf32>
    %61 = vector.broadcast %57 : vector<8x1xf32> to vector<8x256xf32>
    %62 = arith.mulf %34, %61 : vector<8x256xf32>
    %63 = vector.broadcast %60 : vector<8x1xf32> to vector<8x256xf32>
    %64 = arith.addf %62, %63 : vector<8x256xf32>
    %cst_61 = arith.constant 0.000000e+00 : f32
    %65 = vector.broadcast %cst_61 : f32 to vector<8x256xf32>
    %66 = arith.maximumf %64, %65 : vector<8x256xf32>
    %c0_62 = arith.constant 0 : index
    %c0_63 = arith.constant 0 : index
    %67 = vector.load %arg5[%c0_62, %c0_63] : memref<8x256xf32, #tpu.memory_space<vmem>>, vector<8x256xf32>
    tpu.vector_store %arg5[%c0_62, %c0_63], %66 {strides = array<i32>} : memref<8x256xf32, #tpu.memory_space<vmem>>, vector<8x256xf32>,
    return
  }
}

</mosaic_0001>

<llo_original>
// kernel: downsample2d.1
$region0: #{downsample2d.1}
  #allocation0 [shape = 'u32[]', space=smem, size = 0x4, offset = 0x4, fixed_abs, tag = 'smem constant byte address 0x4 - core index']
  #allocation1 [shape = 'u32[144,128]{1,0:T(1,128)}', space=vmem, size = 0x12000, scoped, tag = 'internal scratch']
  #allocation2 [shape = 'f32[64,256]{1,0:T(8,128)}', space=vmem, size = 0x10000, scoped, tag = 'scratch operand']
  %s0 = inlined_call_operand.vmem [shape: f32[16,384], index: 0, kind: input, shape index: {}]
  %s1 = inlined_call_operand.vmem [shape: f32[8,64], index: 1, kind: input, shape index: {}]
  %s2 = inlined_call_operand.vmem [shape: f32[8,1], index: 2, kind: input, shape index: {}]
  %s3 = inlined_call_operand.vmem [shape: f32[8,1], index: 3, kind: input, shape index: {}]
  %s4 = inlined_call_operand.vmem [shape: f32[1,256], index: 4, kind: input, shape index: {}]
  %s5 = inlined_call_operand.vmem [shape: f32[8,256], index: 5, kind: output, shape index: {}]
  %s6 = sld [smem:[#allocation0]]
  $region30: #{downsample2d.1} parent=0
    _
  %s8 = ssub.s32 1, %s6
  %s9 = scalar_select 0, %s8, %s6
  // Predicated region
  $region2: #{downsample2d.1} parent=0 // pred_check
    _
  $region3: #{downsample2d.1} parent=0 // pred_check_branch
    %11 = sbr.rel (0) target = $region5
  $region4: #{downsample2d.1} parent=0 // pred_region
    _
  $region5: #{downsample2d.1} parent=0 // pred_fallthru
    _
  // Predicated region
  $region6: #{downsample2d.1} parent=0 // pred_check
    _
  $region7: #{downsample2d.1} parent=0 // pred_check_branch
    %13 = sbr.rel (0) target = $region9
  $region8: #{downsample2d.1} parent=0 // pred_region
    _
  $region9: #{downsample2d.1} parent=0 // pred_fallthru
    _
  // Predicated region
  $region10: #{downsample2d.1} parent=0 // pred_check
    _
  $region11: #{downsample2d.1} parent=0 // pred_check_branch
    %15 = sbr.rel (0) target = $region13
  $region12: #{downsample2d.1} parent=0 // pred_region
    _
  $region13: #{downsample2d.1} parent=0 // pred_fallthru
    _
  // Predicated region
  $region14: #{downsample2d.1} parent=0 // pred_check
    _
  $region15: #{downsample2d.1} parent=0 // pred_check_branch
    %17 = sbr.rel (0) target = $region17
  $region16: #{downsample2d.1} parent=0 // pred_region
    _
  $region17: #{downsample2d.1} parent=0 // pred_fallthru
    _
  // Predicated region
  $region18: #{downsample2d.1} parent=0 // pred_check
    _
  $region19: #{downsample2d.1} parent=0 // pred_check_branch
    %19 = sbr.rel (0) target = $region21
  $region20: #{downsample2d.1} parent=0 // pred_region
    _
  $region21: #{downsample2d.1} parent=0 // pred_fallthru
    _
  %v20 = vld [vmem:[%s0] sm:$0xf]
  %v21 = vld [vmem:[%s0 + $0x8] sm:$0xf]
  %22 = vst [vmem:[#allocation2] sm:$0xf] %v20
  %23 = vst [vmem:[#allocation2 + $0x8] sm:$0xf] %v21
  %v24 = vld [vmem:[%s0] sm:$0xf0]
  %v25 = vld [vmem:[%s0 + $0x8] sm:$0xf0]
  %26 = vst [vmem:[#allocation2] sm:$0xf0] %v24
  %27 = vst [vmem:[#allocation2 + $0x8] sm:$0xf0] %v25
  %v28 = vld [vmem:[%s0] sm:$0xf]
  %v29 = vld [vmem:[%s0 + $0x8] sm:$0xf]
  %v30 = vld [vmem:[%s0 + $0x10] sm:$0xf]
  %34 = vrot.lane.b32.xlu0 %v28, 127
  %v35 = vpop.permute.xlu0 %34
  %36 = vrot.lane.b32.xlu0 %v29, 127
  %v37 = vpop.permute.xlu0 %36
  %38 = vrot.lane.b32.xlu0 %v30, 127
  %v39 = vpop.permute.xlu0 %38
  %vm40 = vcmask 1039360
  %v41 = vsel %vm40, %v35, %v37
  %v42 = vsel %vm40, %v37, %v39
  %45 = vst [vmem:[#allocation2 + $0x10] sm:$0xf] %v41
  %46 = vst [vmem:[#allocation2 + $0x18] sm:$0xf] %v42
  %v47 = vld [vmem:[%s0] sm:$0xf0]
  %v48 = vld [vmem:[%s0 + $0x8] sm:$0xf0]
  %v49 = vld [vmem:[%s0 + $0x10] sm:$0xf0]
  %53 = vrot.lane.b32.xlu0 %v47, 127
  %v54 = vpop.permute.xlu0 %53
  %55 = vrot.lane.b32.xlu0 %v48, 127
  %v56 = vpop.permute.xlu0 %55
  %57 = vrot.lane.b32.xlu0 %v49, 127
  %v58 = vpop.permute.xlu0 %57
  %v59 = vsel %vm40, %v54, %v56
  %v60 = vsel %vm40, %v56, %v58
  %63 = vst [vmem:[#allocation2 + $0x10] sm:$0xf0] %v59
  %64 = vst [vmem:[#allocation2 + $0x18] sm:$0xf0] %v60
  %v65 = vld [vmem:[%s0 + $0x18] sm:$0xf]
  %v66 = vld [vmem:[%s0 + $0x20] sm:$0xf]
  %67 = vst [vmem:[#allocation2 + $0x20] sm:$0xf] %v65
  %68 = vst [vmem:[#allocation2 + $0x28] sm:$0xf] %v66
  %v69 = vld [vmem:[%s0 + $0x18] sm:$0xf0]
  %v70 = vld [vmem:[%s0 + $0x20] sm:$0xf0]
  %71 = vst [vmem:[#allocation2 + $0x20] sm:$0xf0] %v69
  %72 = vst [vmem:[#allocation2 + $0x28] sm:$0xf0] %v70
  %v73 = vld [vmem:[%s0 + $0x18] sm:$0xf]
  %v74 = vld [vmem:[%s0 + $0x20] sm:$0xf]
  %v75 = vld [vmem:[%s0 + $0x28] sm:$0xf]
  %79 = vrot.lane.b32.xlu0 %v73, 127
  %v80 = vpop.permute.xlu0 %79
  %81 = vrot.lane.b32.xlu0 %v74, 127
  %v82 = vpop.permute.xlu0 %81
  %83 = vrot.lane.b32.xlu0 %v75, 127
  %v84 = vpop.permute.xlu0 %83
  %v85 = vsel %vm40, %v80, %v82
  %v86 = vsel %vm40, %v82, %v84
  %89 = vst [vmem:[#allocation2 + $0x30] sm:$0xf] %v85
  %90 = vst [vmem:[#allocation2 + $0x38] sm:$0xf] %v86
  %v91 = vld [vmem:[%s0 + $0x18] sm:$0xf0]
  %v92 = vld [vmem:[%s0 + $0x20] sm:$0xf0]
  %v93 = vld [vmem:[%s0 + $0x28] sm:$0xf0]
  %97 = vrot.lane.b32.xlu0 %v91, 127
  %v98 = vpop.permute.xlu0 %97
  %99 = vrot.lane.b32.xlu0 %v92, 127
  %v100 = vpop.permute.xlu0 %99
  %101 = vrot.lane.b32.xlu0 %v93, 127
  %v102 = vpop.permute.xlu0 %101
  %v103 = vsel %vm40, %v98, %v100
  %v104 = vsel %vm40, %v100, %v102
  %107 = vst [vmem:[#allocation2 + $0x30] sm:$0xf0] %v103
  %108 = vst [vmem:[#allocation2 + $0x38] sm:$0xf0] %v104
  %v109 = vld [vmem:[%s0] sm:$0xf]
  %v110 = vld [vmem:[%s0 + $0x8] sm:$0xf]
  %v111 = vld [vmem:[%s0 + $0x10] sm:$0xf]
  %115 = vrot.lane.b32.xlu0 %v109, 119
  %v116 = vpop.permute.xlu0 %115
  %117 = vrot.lane.b32.xlu0 %v110, 119
  %v118 = vpop.permute.xlu0 %117
  %119 = vrot.lane.b32.xlu0 %v111, 119
  %v120 = vpop.permute.xlu0 %119
  %vm121 = vcmask 973824
  %v122 = vsel %vm121, %v116, %v118
  %v123 = vsel %vm121, %v118, %v120
  %126 = vst [vmem:[#allocation2 + $0x40] sm:$0xf] %v122
  %127 = vst [vmem:[#allocation2 + $0x48] sm:$0xf] %v123
  %v128 = vld [vmem:[%s0] sm:$0xf0]
  %v129 = vld [vmem:[%s0 + $0x8] sm:$0xf0]
  %v130 = vld [vmem:[%s0 + $0x10] sm:$0xf0]
  %134 = vrot.lane.b32.xlu0 %v128, 119
  %v135 = vpop.permute.xlu0 %134
  %136 = vrot.lane.b32.xlu0 %v129, 119
  %v137 = vpop.permute.xlu0 %136
  %138 = vrot.lane.b32.xlu0 %v130, 119
  %v139 = vpop.permute.xlu0 %138
  %v140 = vsel %vm121, %v135, %v137
  %v141 = vsel %vm121, %v137, %v139
  %144 = vst [vmem:[#allocation2 + $0x40] sm:$0xf0] %v140
  %145 = vst [vmem:[#allocation2 + $0x48] sm:$0xf0] %v141
  %v146 = vld [vmem:[%s0] sm:$0xf]
  %v147 = vld [vmem:[%s0 + $0x8] sm:$0xf]
  %v148 = vld [vmem:[%s0 + $0x10] sm:$0xf]
  %152 = vrot.lane.b32.xlu0 %v146, 118
  %v153 = vpop.permute.xlu0 %152
  %154 = vrot.lane.b32.xlu0 %v147, 118
  %v155 = vpop.permute.xlu0 %154
  %156 = vrot.lane.b32.xlu0 %v148, 118
  %v157 = vpop.permute.xlu0 %156
  %vm158 = vcmask 965632
  %v159 = vsel %vm158, %v153, %v155
  %v160 = vsel %vm158, %v155, %v157
  %163 = vst [vmem:[#allocation2 + $0x50] sm:$0xf] %v159
  %164 = vst [vmem:[#allocation2 + $0x58] sm:$0xf] %v160
  %v165 = vld [vmem:[%s0] sm:$0xf0]
  %v166 = vld [vmem:[%s0 + $0x8] sm:$0xf0]
  %v167 = vld [vmem:[%s0 + $0x10] sm:$0xf0]
  %171 = vrot.lane.b32.xlu0 %v165, 118
  %v172 = vpop.permute.xlu0 %171
  %173 = vrot.lane.b32.xlu0 %v166, 118
  %v174 = vpop.permute.xlu0 %173
  %175 = vrot.lane.b32.xlu0 %v167, 118
  %v176 = vpop.permute.xlu0 %175
  %v177 = vsel %vm158, %v172, %v174
  %v178 = vsel %vm158, %v174, %v176
  %181 = vst [vmem:[#allocation2 + $0x50] sm:$0xf0] %v177
  %182 = vst [vmem:[#allocation2 + $0x58] sm:$0xf0] %v178
  %v183 = vld [vmem:[%s0 + $0x18] sm:$0xf]
  %v184 = vld [vmem:[%s0 + $0x20] sm:$0xf]
  %v185 = vld [vmem:[%s0 + $0x28] sm:$0xf]
  %189 = vrot.lane.b32.xlu0 %v183, 119
  %v190 = vpop.permute.xlu0 %189
  %191 = vrot.lane.b32.xlu0 %v184, 119
  %v192 = vpop.permute.xlu0 %191
  %193 = vrot.lane.b32.xlu0 %v185, 119
  %v194 = vpop.permute.xlu0 %193
  %v195 = vsel %vm121, %v190, %v192
  %v196 = vsel %vm121, %v192, %v194
  %199 = vst [vmem:[#allocation2 + $0x60] sm:$0xf] %v195
  %200 = vst [vmem:[#allocation2 + $0x68] sm:$0xf] %v196
  %v201 = vld [vmem:[%s0 + $0x18] sm:$0xf0]
  %v202 = vld [vmem:[%s0 + $0x20] sm:$0xf0]
  %v203 = vld [vmem:[%s0 + $0x28] sm:$0xf0]
  %207 = vrot.lane.b32.xlu0 %v201, 119
  %v208 = vpop.permute.xlu0 %207
  %209 = vrot.lane.b32.xlu0 %v202, 119
  %v210 = vpop.permute.xlu0 %209
  %211 = vrot.lane.b32.xlu0 %v203, 119
  %v212 = vpop.permute.xlu0 %211
  %v213 = vsel %vm121, %v208, %v210
  %v214 = vsel %vm121, %v210, %v212
  %217 = vst [vmem:[#allocation2 + $0x60] sm:$0xf0] %v213
  %218 = vst [vmem:[#allocation2 + $0x68] sm:$0xf0] %v214
  %v219 = vld [vmem:[%s0 + $0x18] sm:$0xf]
  %v220 = vld [vmem:[%s0 + $0x20] sm:$0xf]
  %v221 = vld [vmem:[%s0 + $0x28] sm:$0xf]
  %225 = vrot.lane.b32.xlu0 %v219, 118
  %v226 = vpop.permute.xlu0 %225
  %227 = vrot.lane.b32.xlu0 %v220, 118
  %v228 = vpop.permute.xlu0 %227
  %229 = vrot.lane.b32.xlu0 %v221, 118
  %v230 = vpop.permute.xlu0 %229
  %v231 = vsel %vm158, %v226, %v228
  %v232 = vsel %vm158, %v228, %v230
  %235 = vst [vmem:[#allocation2 + $0x70] sm:$0xf] %v231
  %236 = vst [vmem:[#allocation2 + $0x78] sm:$0xf] %v232
  %v237 = vld [vmem:[%s0 + $0x18] sm:$0xf0]
  %v238 = vld [vmem:[%s0 + $0x20] sm:$0xf0]
  %v239 = vld [vmem:[%s0 + $0x28] sm:$0xf0]
  %243 = vrot.lane.b32.xlu0 %v237, 118
  %v244 = vpop.permute.xlu0 %243
  %245 = vrot.lane.b32.xlu0 %v238, 118
  %v246 = vpop.permute.xlu0 %245
  %247 = vrot.lane.b32.xlu0 %v239, 118
  %v248 = vpop.permute.xlu0 %247
  %v249 = vsel %vm158, %v244, %v246
  %v250 = vsel %vm158, %v246, %v248
  %253 = vst [vmem:[#allocation2 + $0x70] sm:$0xf0] %v249
  %254 = vst [vmem:[#allocation2 + $0x78] sm:$0xf0] %v250
  %v255 = vld [vmem:[%s1] sm:$0xff]
  %v256 = vld [vmem:[#allocation2] sm:$0xff]
  %v257 = vld [vmem:[#allocation2 + $0x8] sm:$0xff]
  %v258 = vld [vmem:[#allocation2 + $0x10] sm:$0xff]
  %v259 = vld [vmem:[#allocation2 + $0x18] sm:$0xff]
  %v260 = vld [vmem:[#allocation2 + $0x20] sm:$0xff]
  %v261 = vld [vmem:[#allocation2 + $0x28] sm:$0xff]
  %v262 = vld [vmem:[#allocation2 + $0x30] sm:$0xff]
  %v263 = vld [vmem:[#allocation2 + $0x38] sm:$0xff]
  %v264 = vld [vmem:[#allocation2 + $0x40] sm:$0xff]
  %v265 = vld [vmem:[#allocation2 + $0x48] sm:$0xff]
  %v266 = vld [vmem:[#allocation2 + $0x50] sm:$0xff]
  %v267 = vld [vmem:[#allocation2 + $0x58] sm:$0xff]
  %v268 = vld [vmem:[#allocation2 + $0x60] sm:$0xff]
  %v269 = vld [vmem:[#allocation2 + $0x68] sm:$0xff]
  %v270 = vld [vmem:[#allocation2 + $0x70] sm:$0xff]
  %v271 = vld [vmem:[#allocation2 + $0x78] sm:$0xff]
  %vm272 = vcmask 523264
  %v274 = vsel %vm272, %v255, 0
  %276 = vmatprep.subr.mxu0 0.0
  %277 = vmatpush1.msra.mxu0 0.0
  %278 = vmatprep.subr.mxu0 0.0
  %279 = vmatpush1.msra.mxu0 0.0
  %280 = vmatprep.subr.mxu0 0.0
  %281 = vmatpush1.msra.mxu0 0.0
  %282 = vmatprep.subr.mxu0 0.0
  %283 = vmatpush1.msra.mxu0 0.0
  %284 = vmatprep.subr.mxu0 0.0
  %285 = vmatpush1.msra.mxu0 0.0
  %286 = vmatprep.subr.mxu0 0.0
  %287 = vmatpush1.msra.mxu0 0.0
  %288 = vmatprep.subr.mxu0 0.0
  %289 = vmatpush1.msra.mxu0 0.0
  %290 = vmatprep.subr.mxu0 0.0
  %291 = vmatpush1.msra.mxu0 0.0
  %292 = vmatprep.subr.mxu0 %v271
  %293 = vmatpush1.msra.mxu0 %v270
  %294 = vmatprep.subr.mxu0 %v269
  %295 = vmatpush1.msra.mxu0 %v268
  %296 = vmatprep.subr.mxu0 %v267
  %297 = vmatpush1.msra.mxu0 %v266
  %298 = vmatprep.subr.mxu0 %v265
  %299 = vmatpush1.msra.mxu0 %v264
  %300 = vmatprep.subr.mxu0 %v263
  %301 = vmatpush1.msra.mxu0 %v262
  %302 = vmatprep.subr.mxu0 %v261
  %303 = vmatpush1.msra.mxu0 %v260
  %304 = vmatprep.subr.mxu0 %v259
  %305 = vmatpush1.msra.mxu0 %v258
  %306 = vmatprep.subr.mxu0 %v257
  %307 = vmatpush1.msra.mxu0 %v256
  %308 = vmatprep.subr.mxu0 0.0
  %309 = vmatpush2.msra.mxu0 0.0
  %310 = vmatprep.subr.mxu0 0.0
  %311 = vmatpush2.msra.mxu0 0.0
  %312 = vmatprep.subr.mxu0 0.0
  %313 = vmatpush2.msra.mxu0 0.0
  %314 = vmatprep.subr.mxu0 0.0
  %315 = vmatpush2.msra.mxu0 0.0
  %316 = vmatprep.subr.mxu0 0.0
  %317 = vmatpush2.msra.mxu0 0.0
  %318 = vmatprep.subr.mxu0 0.0
  %319 = vmatpush2.msra.mxu0 0.0
  %320 = vmatprep.subr.mxu0 0.0
  %321 = vmatpush2.msra.mxu0 0.0
  %322 = vmatprep.subr.mxu0 0.0
  %323 = vmatpush2.msra.mxu0 0.0
  %324 = vmatprep.subr.mxu0 0.0
  %325 = vmatpush2.msra.mxu0 0.0
  %326 = vmatprep.subr.mxu0 0.0
  %327 = vmatpush2.msra.mxu0 0.0
  %328 = vmatprep.subr.mxu0 0.0
  %329 = vmatpush2.msra.mxu0 0.0
  %330 = vmatprep.subr.mxu0 0.0
  %331 = vmatpush2.msra.mxu0 0.0
  %332 = vmatprep.subr.mxu0 0.0
  %333 = vmatpush2.msra.mxu0 0.0
  %334 = vmatprep.subr.mxu0 0.0
  %335 = vmatpush2.msra.mxu0 0.0
  %336 = vmatprep.subr.mxu0 0.0
  %337 = vmatpush2.msra.mxu0 0.0
  %338 = vmatprep.subr.mxu0 0.0
  %339 = vmatpush2.msra.mxu0 0.0
  %340 = vmatprep.mubr.f32.mxu0 0.0
  %341 = vmatmul.mubr.f32.gmra.mxu0 %v274
  %v342 = vpop.f32.mrf.mxu0
  %v343 = vadd.f32 0.0, %v342
  %v344 = vpop.f32.mrf.mxu0
  %v345 = vadd.f32 0.0, %v344
  %346 = vdwg.mxu0
  %v347 = vld [vmem:[%s4] sm:$0x3]
  %v349 = vlaneseq
  %v350 = vshrl.u32 %v349, 7
  %v351 = vsub.s32 0, %v350
  %v352 = vrot.slane %v347, %v351
  %v353 = vlaneseq
  %v354 = vshrl.u32 %v353, 7
  %v355 = vsub.s32 1, %v354
  %v356 = vrot.slane %v347, %v355
  %v359 = vmul.f32 %v343, %v352
  %v360 = vmul.f32 %v345, %v356
  %v361 = vadd.f32 %v359, %v360
  %362 = vadd.xlane.f32.xlu0 %v361
  %v363 = vpop.xlane.xlu0 %362
  %v364 = vmul.f32 %v363, 0.0078125
  %v365 = vmul.f32 %v343, %v343
  %v366 = vmul.f32 %v345, %v345
  %v367 = vmul.f32 %v365, %v352
  %v368 = vmul.f32 %v366, %v356
  %v369 = vadd.f32 %v367, %v368
  %370 = vadd.xlane.f32.xlu0 %v369
  %v371 = vpop.xlane.xlu0 %370
  %v372 = vmul.f32 %v371, 0.0078125
  %v373 = vmul.f32 %v364, %v364
  %v374 = vsub.f32 %v372, %v373
  %v375 = vmax.f32 %v374, 0.0
  %v376 = vld [vmem:[%s2] sm:$0xff]
  %v377 = vadd.f32 %v375, 1e-05
  %v378 = vrsqrt.pop %v377
  %v379 = vmul.f32 %v376, %v378
  %v380 = vld [vmem:[%s3] sm:$0xff]
  %v381 = vmul.f32 %v364, %v379
  %v382 = vsub.f32 %v380, %v381
  %384 = vset.pattern.permute.xlu0 0
  %385 = vperm.xlu0 %384, %v379
  %v386 = vpop.permute.xlu0 %385
  %v388 = vmul.f32 %v343, %v386
  %v389 = vmul.f32 %v345, %v386
  %391 = vset.pattern.permute.xlu0 0
  %392 = vperm.xlu0 %391, %v382
  %v393 = vpop.permute.xlu0 %392
  %v395 = vadd.f32 %v388, %v393
  %v396 = vadd.f32 %v389, %v393
  %v397 = vmax.f32 %v395, 0.0
  %v398 = vmax.f32 %v396, 0.0
  %399 = vst [vmem:[%s5] sm:$0xff] %v397
  %400 = vst [vmem:[%s5 + $0x8] sm:$0xff] %v398
  // Predicated region
  $region22: #{downsample2d.1} parent=0 // pred_check
    _
  $region23: #{downsample2d.1} parent=0 // pred_check_branch
    %402 = sbr.rel (0) target = $region25
  $region24: #{downsample2d.1} parent=0 // pred_region
    _
  $region25: #{downsample2d.1} parent=0 // pred_fallthru
    _
  // Predicated region
  $region26: #{downsample2d.1} parent=0 // pred_check
    _
  $region27: #{downsample2d.1} parent=0 // pred_check_branch
    %404 = sbr.rel (0) target = $region29
  $region28: #{downsample2d.1} parent=0 // pred_region
    _
  $region29: #{downsample2d.1} parent=0 // pred_fallthru
    _

</llo_original>
